<compile_context>
chip_gen: v6e
topology: v6e:2x2x1
jax: 0.10.0
libtpu: 0.0.40
codegen_flags: <defaults>
</compile_context>

<pallas_src>
import functools
import math

import numpy as np

import jax
import jax.numpy as jnp
from jax import lax
from jax.experimental import pallas as pl
from jax.experimental.pallas import tpu as pltpu


def _erf(x):
    # Abramowitz & Stegun 7.1.26, |abs error| < 1.5e-7 (VPU ops + one EUP exp).
    # TODO(synk): switch to lax.erf if/when Mosaic grows a native erf lowering.
    a1, a2, a3, a4, a5 = 0.254829592, -0.284496736, 1.421413741, -1.453152027, 1.061405429
    p = 0.3275911
    sign = jnp.where(x < 0.0, -1.0, 1.0)
    ax = jnp.abs(x)
    t = 1.0 / (1.0 + p * ax)
    poly = ((((a5 * t + a4) * t + a3) * t + a2) * t + a1) * t
    return sign * (1.0 - poly * jnp.exp(-ax * ax))


def _gelu_exact(x):
    return 0.5 * x * (1.0 + _erf(x * (1.0 / math.sqrt(2.0))))


def fcu_down_kernel(x_ref, pool_ref, wt_ref, p_ref, out_ref):
    """One batch block of B images per grid step.

    x_ref    : (B, H*W, C_in) bf16   pixels on sublanes, channels on lanes
    pool_ref : (T, H*W)       bf16   row t = 1/s^2 over pooled cell t
    wt_ref   : (C_in, C_out)  bf16   1x1 conv_project weight, pre-transposed
    p_ref    : (3, C_out)     f32    rows = (conv bias, ln gamma, ln beta)
    out_ref  : (B, T, C_out)  f32    token slab (class token prepended on host)
    """
    B, T, C_out = out_ref.shape
    pool = pool_ref[...]

    # AvgPool2d(s) as a matmul: (T, HW) @ (HW, C_in) per image. Contraction is
    # LHS-last x RHS-sublane, so Mosaic emits no transpose. bf16 MXU, f32 acc.
    pooled = [jnp.dot(pool, x_ref[b], preferred_element_type=jnp.float32)
              for b in range(B)]
    pooled = pooled[0] if B == 1 else jnp.concatenate(pooled, axis=0)  # (B*T, C_in)

    # 1x1 conv_project (commutes with the pooling above); one matmul with
    # M = B*T rows to fill the MXU, bias added in f32.
    tok = jnp.dot(pooled.astype(jnp.bfloat16), wt_ref[...],
                  preferred_element_type=jnp.float32)
    tok = tok + p_ref[0:1, :]

    # LayerNorm over channels (lane axis), eps = 1e-6, one-pass moments.
    mu = jnp.mean(tok, axis=-1, keepdims=True)
    var = jnp.mean(tok * tok, axis=-1, keepdims=True) - mu * mu
    inv = lax.rsqrt(var + 1e-6)
    tok = (tok - mu) * inv * p_ref[1:2, :] + p_ref[2:3, :]

    # GELU (exact erf formulation, matching nn.GELU()).
    tok = _gelu_exact(tok)

    out_ref[...] = tok.reshape(B, T, C_out).astype(out_ref.dtype)


@functools.lru_cache(maxsize=None)
def make_pool_matrix(H, W, s):
    """(T, H*W) averaging matrix: P[t, p] = 1/s^2 iff pixel p is in pooled cell t.

    Built with numpy and cached so it is a host constant, not re-traced / re-
    uploaded per call. 1/s^2 is exact in bf16 for power-of-two strides.
    """
    Hp, Wp = H // s, W // s
    p = np.arange(H * W)
    h, w = p // W, p % W
    cell = (h // s) * Wp + (w // s)
    m = (np.arange(Hp * Wp)[:, None] == cell[None, :]).astype(np.float32) / float(s * s)
    return jnp.asarray(m, dtype=jnp.bfloat16)


def _pick_batch_block(N, T):
    """Batch block B: fill the MXU M dim (B*T rows, up to 256) while keeping
    >= 2 grid steps for v7x megacore when that does not cost MXU occupancy."""
    fitting = [b for b in range(1, N + 1) if N % b == 0 and b * T <= 256]
    if not fitting:
        return 1
    B = max(fitting)
    if N // B < 2:
        two_step = [b for b in fitting if N // b >= 2]
        if two_step and (B * T <= 128 or max(two_step) * T >= 128):
            B = max(two_step)
    return B


def fcu_down_forward(x_nchw, x_t, params, dw_stride):
    """FCUDown.forward: x (N, C_in, H, W), x_t (N, S, C_out) -> (N, 1+T, C_out)."""
    w, b, gamma, beta = params
    N, C_in, H, W = x_nchw.shape
    C_out = w.shape[0]
    # TODO(synk): PyTorch AvgPool2d silently truncates when H/W is not divisible
    # by dw_stride; that case is not implemented here.
    assert H % dw_stride == 0 and W % dw_stride == 0
    T = (H // dw_stride) * (W // dw_stride)
    B = _pick_batch_block(N, T)

    # bf16 matmul operands (halves the dominant x DMA, full-rate MXU path);
    # LayerNorm / GELU stay in f32 inside the kernel.
    x = jnp.transpose(x_nchw.astype(jnp.bfloat16).reshape(N, C_in, H * W),
                      (0, 2, 1))                                   # (N, H*W, C_in)
    pool = make_pool_matrix(H, W, dw_stride)                       # (T, H*W) bf16
    w_t = jnp.transpose(w).astype(jnp.bfloat16)                    # (C_in, C_out)
    p_packed = jnp.stack([b, gamma, beta]).astype(jnp.float32)     # (3, C_out)

    tokens = pl.pallas_call(
        fcu_down_kernel,
        out_shape=jax.ShapeDtypeStruct((N, T, C_out), jnp.float32),
        grid_spec=pltpu.PrefetchScalarGridSpec(
            num_scalar_prefetch=0,
            grid=(N // B,),
            in_specs=[
                pl.BlockSpec((B, H * W, C_in), lambda n: (n, 0, 0)),
                # Grid-invariant operands (at real Conformer shapes these could
                # also be marked single-buffered to save VMEM headroom).
                pl.BlockSpec((T, H * W), lambda n: (0, 0)),
                pl.BlockSpec((C_in, C_out), lambda n: (0, 0)),
                pl.BlockSpec((3, C_out), lambda n: (0, 0)),
            ],
            out_specs=pl.BlockSpec((B, T, C_out), lambda n: (n, 0, 0)),
        ),
        compiler_params=pltpu.CompilerParams(
            dimension_semantics=("parallel",)),
    )(x, pool, w_t, p_packed)

    # torch.cat([x_t[:, 0:1], tokens], dim=1) done on the host: the kernel only
    # writes the sublane-aligned token slab.
    cls = x_t[:, :1, :].astype(jnp.float32)
    return jnp.concatenate([cls, tokens], axis=1)


def ref_forward(x_nchw, x_t, params, dw_stride):
    """Pure-JAX f32 reference mirroring the PyTorch module (inference)."""
    w, b, gamma, beta = params
    N, C_in, H, W = x_nchw.shape
    C_out = w.shape[0]
    s = dw_stride
    x = x_nchw.astype(jnp.float32)

    y = lax.conv_general_dilated(x, w.reshape(C_out, C_in, 1, 1), (1, 1), 'VALID',
                                 dimension_numbers=('NCHW', 'OIHW', 'NCHW'))
    y = y + b.reshape(1, C_out, 1, 1)

    Hp, Wp = H // s, W // s
    y = y.reshape(N, C_out, Hp, s, Wp, s).mean(axis=(3, 5))        # AvgPool2d(s)
    y = y.reshape(N, C_out, Hp * Wp).transpose(0, 2, 1)            # flatten + transpose

    mu = y.mean(-1, keepdims=True)
    var = ((y - mu) ** 2).mean(-1, keepdims=True)
    y = (y - mu) / jnp.sqrt(var + 1e-6)
    y = y * gamma.reshape(1, 1, C_out) + beta.reshape(1, 1, C_out)

    y = jax.nn.gelu(y, approximate=False)                          # exact GELU
    return jnp.concatenate([x_t[:, :1, :].astype(jnp.float32), y], axis=1)


if __name__ == "__main__":
    # Small shapes consistent with the module: feature map (4, 32, 16, 16),
    # dw_stride=4 -> 16 spatial tokens per image, transformer embed dim 128.
    # N=4 exercises the batch-blocked grid: B=2 images per step, 2 parallel steps.
    N, C_in, H, W = 4, 32, 16, 16
    C_out = 128
    dw_stride = 4
    T = (H // dw_stride) * (W // dw_stride)

    key = jax.random.PRNGKey(0)
    kx, kt, kw, kb = jax.random.split(key, 4)
    x = jax.random.normal(kx, (N, C_in, H, W), jnp.float32)        # CNN feature map (NCHW)
    x_t = jax.random.normal(kt, (N, 1 + T, C_out), jnp.float32)    # transformer tokens

    w = 0.1 * jax.random.normal(kw, (C_out, C_in), jnp.float32)    # conv_project weight
    b = 0.05 * jax.random.normal(kb, (C_out,), jnp.float32)        # conv_project bias
    idx = jnp.arange(C_out, dtype=jnp.float32)
    gamma = 1.0 + 0.05 * jnp.cos(idx)                              # LayerNorm weight
    beta = 0.02 * jnp.sin(idx)                                     # LayerNorm bias
    params = (w, b, gamma, beta)

    out = fcu_down_forward(x, x_t, params, dw_stride)
    out = jax.block_until_ready(out)

    ref = ref_forward(x, x_t, params, dw_stride)
    assert out.shape == (N, 1 + T, C_out)
    # bf16 matmul inputs (f32 accumulation) vs the all-f32 reference.
    assert jnp.allclose(out, ref, rtol=2e-2, atol=2e-2), (
        "mismatch: max abs err %e" % float(jnp.max(jnp.abs(out - ref))))

    print("KERNEL_OK")
</pallas_src>

<mosaic_0001>
module attributes {stable_mosaic.version = 11 : i64} {
  func.func @fcu_down_kernel(%arg0: i32, %arg1: memref<2x256x32xbf16, #tpu.memory_space<vmem>>, %arg2: memref<16x256xbf16, #tpu.memory_space<vmem>>, %arg3: memref<32x128xbf16, #tpu.memory_space<vmem>>, %arg4: memref<3x128xf32, #tpu.memory_space<vmem>>, %arg5: memref<2x16x128xf32, #tpu.memory_space<vmem>>) attributes {dimension_semantics = [#tpu.dimension_semantics<parallel>], iteration_bounds = array<i64: 2>, scalar_prefetch = 0 : i64, scratch_operands = 0 : i64, tpu.core_type = #tpu.core_type<tc>, window_params = [{transform_indices = @transform_0, window_bounds = array<i64: 2, 256, 32>}, {pipeline_mode = #tpu.pipeline_mode<synchronous>, transform_indices = @transform_1, window_bounds = array<i64: 16, 256>}, {pipeline_mode = #tpu.pipeline_mode<synchronous>, transform_indices = @transform_2, window_bounds = array<i64: 32, 128>}, {pipeline_mode = #tpu.pipeline_mode<synchronous>, transform_indices = @transform_3, window_bounds = array<i64: 3, 128>}, {transform_indices = @transform_4, window_bounds = array<i64: 2, 16, 128>}]} {
    %c0 = arith.constant 0 : index
    %c0_0 = arith.constant 0 : index
    %0 = vector.load %arg2[%c0, %c0_0] : memref<16x256xbf16, #tpu.memory_space<vmem>>, vector<16x256xbf16>
    %c0_1 = arith.constant 0 : index
    %c0_2 = arith.constant 0 : index
    %c0_3 = arith.constant 0 : index
    %1 = vector.load %arg1[%c0_1, %c0_2, %c0_3] : memref<2x256x32xbf16, #tpu.memory_space<vmem>>, vector<1x256x32xbf16>
    %2 = vector.shape_cast %1 : vector<1x256x32xbf16> to vector<256x32xbf16>
    %cst = arith.constant dense<0.000000e+00> : vector<16x32xf32>
    %3 = tpu.matmul %0, %2, %cst {dimension_numbers = #tpu.dot_dimension_numbers<[1], [0], [0], [1], [0, 0, 1, 1], [], []>} : vector<16x256xbf16>, vector<256x32xbf16>, vector<16x32xf32> -> vector<16x32xf32>
    %c1 = arith.constant 1 : index
    %c0_4 = arith.constant 0 : index
    %c0_5 = arith.constant 0 : index
    %4 = vector.load %arg1[%c1, %c0_4, %c0_5] : memref<2x256x32xbf16, #tpu.memory_space<vmem>>, vector<1x256x32xbf16>
    %5 = vector.shape_cast %4 : vector<1x256x32xbf16> to vector<256x32xbf16>
    %cst_6 = arith.constant dense<0.000000e+00> : vector<16x32xf32>
    %6 = tpu.matmul %0, %5, %cst_6 {dimension_numbers = #tpu.dot_dimension_numbers<[1], [0], [0], [1], [0, 0, 1, 1], [], []>} : vector<16x256xbf16>, vector<256x32xbf16>, vector<16x32xf32> -> vector<16x32xf32>
    %7 = tpu.concatenate %3, %6 in 0 : vector<16x32xf32>, vector<16x32xf32> -> vector<32x32xf32>
    %8 = arith.truncf %7 : vector<32x32xf32> to vector<32x32xbf16>
    %c0_7 = arith.constant 0 : index
    %c0_8 = arith.constant 0 : index
    %9 = vector.load %arg3[%c0_7, %c0_8] : memref<32x128xbf16, #tpu.memory_space<vmem>>, vector<32x128xbf16>
    %cst_9 = arith.constant dense<0.000000e+00> : vector<32x128xf32>
    %10 = tpu.matmul %8, %9, %cst_9 {dimension_numbers = #tpu.dot_dimension_numbers<[1], [0], [0], [1], [0, 0, 1, 1], [], []>} : vector<32x32xbf16>, vector<32x128xbf16>, vector<32x128xf32> -> vector<32x128xf32>
    %c0_10 = arith.constant 0 : index
    %c0_11 = arith.constant 0 : index
    %11 = vector.load %arg4[%c0_10, %c0_11] : memref<3x128xf32, #tpu.memory_space<vmem>>, vector<1x128xf32>
    %12 = vector.broadcast %11 : vector<1x128xf32> to vector<32x128xf32>
    %13 = arith.addf %10, %12 : vector<32x128xf32>
    %cst_12 = arith.constant dense<0.000000e+00> : vector<32xf32>
    %14 = vector.multi_reduction <add>, %13, %cst_12 [1] : vector<32x128xf32> to vector<32xf32>
    %15 = vector.shape_cast %14 : vector<32xf32> to vector<32x1xf32>
    %cst_13 = arith.constant 1.280000e+02 : f32
    %16 = vector.broadcast %cst_13 : f32 to vector<32x1xf32>
    %17 = arith.divf %15, %16 : vector<32x1xf32>
    %18 = arith.mulf %13, %13 : vector<32x128xf32>
    %cst_14 = arith.constant dense<0.000000e+00> : vector<32xf32>
    %19 = vector.multi_reduction <add>, %18, %cst_14 [1] : vector<32x128xf32> to vector<32xf32>
    %20 = vector.shape_cast %19 : vector<32xf32> to vector<32x1xf32>
    %cst_15 = arith.constant 1.280000e+02 : f32
    %21 = vector.broadcast %cst_15 : f32 to vector<32x1xf32>
    %22 = arith.divf %20, %21 : vector<32x1xf32>
    %23 = arith.mulf %17, %17 : vector<32x1xf32>
    %24 = arith.subf %22, %23 : vector<32x1xf32>
    %cst_16 = arith.constant 9.99999997E-7 : f32
    %25 = vector.broadcast %cst_16 : f32 to vector<32x1xf32>
    %26 = arith.addf %24, %25 : vector<32x1xf32>
    %27 = math.rsqrt %26 : vector<32x1xf32>
    %28 = vector.broadcast %17 : vector<32x1xf32> to vector<32x128xf32>
    %29 = arith.subf %13, %28 : vector<32x128xf32>
    %30 = vector.broadcast %27 : vector<32x1xf32> to vector<32x128xf32>
    %31 = arith.mulf %29, %30 : vector<32x128xf32>
    %c1_17 = arith.constant 1 : index
    %c0_18 = arith.constant 0 : index
    %32 = vector.load %arg4[%c1_17, %c0_18] : memref<3x128xf32, #tpu.memory_space<vmem>>, vector<1x128xf32>
    %33 = vector.broadcast %32 : vector<1x128xf32> to vector<32x128xf32>
    %34 = arith.mulf %31, %33 : vector<32x128xf32>
    %c2 = arith.constant 2 : index
    %c0_19 = arith.constant 0 : index
    %35 = vector.load %arg4[%c2, %c0_19] : memref<3x128xf32, #tpu.memory_space<vmem>>, vector<1x128xf32>
    %36 = vector.broadcast %35 : vector<1x128xf32> to vector<32x128xf32>
    %37 = arith.addf %34, %36 : vector<32x128xf32>
    %cst_20 = arith.constant 5.000000e-01 : f32
    %38 = vector.broadcast %cst_20 : f32 to vector<32x128xf32>
    %39 = arith.mulf %38, %37 : vector<32x128xf32>
    %cst_21 = arith.constant 0.707106769 : f32
    %40 = vector.broadcast %cst_21 : f32 to vector<32x128xf32>
    %41 = arith.mulf %37, %40 : vector<32x128xf32>
    %cst_22 = arith.constant 0.000000e+00 : f32
    %42 = vector.broadcast %cst_22 : f32 to vector<32x128xf32>
    %43 = arith.cmpf olt, %41, %42 : vector<32x128xf32>
    %cst_23 = arith.constant -1.000000e+00 : f32
    %cst_24 = arith.constant 1.000000e+00 : f32
    %44 = vector.broadcast %cst_23 : f32 to vector<32x128xf32>
    %45 = vector.broadcast %cst_24 : f32 to vector<32x128xf32>
    %46 = arith.select %43, %44, %45 : vector<32x128xi1>, vector<32x128xf32>
    %47 = math.absf %41 : vector<32x128xf32>
    %cst_25 = arith.constant 0.327591091 : f32
    %48 = vector.broadcast %cst_25 : f32 to vector<32x128xf32>
    %49 = arith.mulf %48, %47 : vector<32x128xf32>
    %cst_26 = arith.constant 1.000000e+00 : f32
    %50 = vector.broadcast %cst_26 : f32 to vector<32x128xf32>
    %51 = arith.addf %50, %49 : vector<32x128xf32>
    %cst_27 = arith.constant 1.000000e+00 : f32
    %52 = vector.broadcast %cst_27 : f32 to vector<32x128xf32>
    %53 = arith.divf %52, %51 : vector<32x128xf32>
    %cst_28 = arith.constant 1.06140542 : f32
    %54 = vector.broadcast %cst_28 : f32 to vector<32x128xf32>
    %55 = arith.mulf %54, %53 : vector<32x128xf32>
    %cst_29 = arith.constant -1.45315206 : f32
    %56 = vector.broadcast %cst_29 : f32 to vector<32x128xf32>
    %57 = arith.addf %55, %56 : vector<32x128xf32>
    %58 = arith.mulf %57, %53 : vector<32x128xf32>
    %cst_30 = arith.constant 1.42141378 : f32
    %59 = vector.broadcast %cst_30 : f32 to vector<32x128xf32>
    %60 = arith.addf %58, %59 : vector<32x128xf32>
    %61 = arith.mulf %60, %53 : vector<32x128xf32>
    %cst_31 = arith.constant -0.284496725 : f32
    %62 = vector.broadcast %cst_31 : f32 to vector<32x128xf32>
    %63 = arith.addf %61, %62 : vector<32x128xf32>
    %64 = arith.mulf %63, %53 : vector<32x128xf32>
    %cst_32 = arith.constant 0.254829586 : f32
    %65 = vector.broadcast %cst_32 : f32 to vector<32x128xf32>
    %66 = arith.addf %64, %65 : vector<32x128xf32>
    %67 = arith.mulf %66, %53 : vector<32x128xf32>
    %cst_33 = arith.constant 0.000000e+00 : f32
    %68 = vector.broadcast %cst_33 : f32 to vector<32x128xf32>
    %69 = arith.subf %68, %47 : vector<32x128xf32>
    %70 = arith.mulf %69, %47 : vector<32x128xf32>
    %71 = math.exp %70 : vector<32x128xf32>
    %72 = arith.mulf %67, %71 : vector<32x128xf32>
    %cst_34 = arith.constant 1.000000e+00 : f32
    %73 = vector.broadcast %cst_34 : f32 to vector<32x128xf32>
    %74 = arith.subf %73, %72 : vector<32x128xf32>
    %75 = arith.mulf %46, %74 : vector<32x128xf32>
    %cst_35 = arith.constant 1.000000e+00 : f32
    %76 = vector.broadcast %cst_35 : f32 to vector<32x128xf32>
    %77 = arith.addf %76, %75 : vector<32x128xf32>
    %78 = arith.mulf %39, %77 : vector<32x128xf32>
    %79 = vector.shape_cast %78 : vector<32x128xf32> to vector<2x16x128xf32>
    %c0_36 = arith.constant 0 : index
    %c0_37 = arith.constant 0 : index
    %c0_38 = arith.constant 0 : index
    %80 = vector.load %arg5[%c0_36, %c0_37, %c0_38] : memref<2x16x128xf32, #tpu.memory_space<vmem>>, vector<2x16x128xf32>
    tpu.vector_store %arg5[%c0_36, %c0_37, %c0_38], %79 {strides = array<i32>} : memref<2x16x128xf32, #tpu.memory_space<vmem>>, vector<2x16x128xf32>,
    return
  }
  func.func @transform_0(%arg0: i32) -> (i32, i32, i32) {
    %c0_i32 = arith.constant 0 : i32
    %c0_i32_0 = arith.constant 0 : i32
    %c0_i32_1 = arith.constant 0 : i32
    return %arg0, %c0_i32, %c0_i32_0 : i32, i32, i32
  }
  func.func @transform_1(%arg0: i32) -> (i32, i32) {
    %c0_i32 = arith.constant 0 : i32
    %c0_i32_0 = arith.constant 0 : i32
    %c0_i32_1 = arith.constant 0 : i32
    return %c0_i32, %c0_i32_0 : i32, i32
  }
  func.func @transform_2(%arg0: i32) -> (i32, i32) {
    %c0_i32 = arith.constant 0 : i32
    %c0_i32_0 = arith.constant 0 : i32
    %c0_i32_1 = arith.constant 0 : i32
    return %c0_i32, %c0_i32_0 : i32, i32
  }
  func.func @transform_3(%arg0: i32) -> (i32, i32) {
    %c0_i32 = arith.constant 0 : i32
    %c0_i32_0 = arith.constant 0 : i32
    %c0_i32_1 = arith.constant 0 : i32
    return %c0_i32, %c0_i32_0 : i32, i32
  }
  func.func @transform_4(%arg0: i32) -> (i32, i32, i32) {
    %c0_i32 = arith.constant 0 : i32
    %c0_i32_0 = arith.constant 0 : i32
    %c0_i32_1 = arith.constant 0 : i32
    return %arg0, %c0_i32, %c0_i32_0 : i32, i32, i32
  }
}

</mosaic_0001>

<llo_original>
// kernel: tpu_custom_call.1
$region0: #{tpu_custom_call.1}
  #allocation0 [shape = 'u32[]', space=smem, size = 0x4, offset = 0x4, fixed_abs, tag = 'smem constant byte address 0x4 - core index']
  #allocation1 [shape = 'u32[144,128]{1,0:T(1,128)}', space=vmem, size = 0x12000, scoped, tag = 'internal scratch']
  %s0 = inlined_call_operand.vmem [shape: bf16[4,256,32], index: 0, kind: input, shape index: {}]
  %s1 = inlined_call_operand.vmem [shape: bf16[16,256], index: 1, kind: input, shape index: {}]
  %s2 = inlined_call_operand.vmem [shape: bf16[32,128], index: 2, kind: input, shape index: {}]
  %s3 = inlined_call_operand.vmem [shape: f32[3,128], index: 3, kind: input, shape index: {}]
  %s4 = inlined_call_operand.hbm [shape: f32[4,16,128], index: 4, kind: output, shape index: {}]
  %s5 = sld [smem:[#allocation0]]
  $region49: #{tpu_custom_call.1} parent=0
    _
  %s7 = ssub.s32 1, %s5
  %s8 = scalar_select 0, %s7, %s5
  $region1: #{tpu_custom_call.1} parent=0
    #allocation2 [shape = 'u8[32768]{0}', space=vmem, size = 0x8000, scoped, tag = 'output window, operand 0']
    #allocation3 [shape = 's32[2]{0}', space=sflag, size = 0x8, scoped, tag = 'scoped memory for tpu_custom_call.1']
    %9 = vsyncpa [#allocation3], 0
    %s10 = scalar_lea.sflag [#allocation3], 1
    %11 = vsyncpa %s10, 0
    loop: start=0, step=1, limit=4
    $region2: #{tpu_custom_call.1} parent=1 // loop_pre_header
      _
    $region3: #{tpu_custom_call.1} parent=1 // loop_header
      %s13 = sphi 0, %s17
      %p14 = scmp.ge.s32.totalorder %s13, 4
      %s23 = sphi 0, %s25
      %s26 = sphi 0, %s23
      %s27 = sphi 0, %s26
      %s43 = sphi 0, %s27
      %s47 = sphi 0, %s47
      %s49 = sphi 0, %s47
      %s50 = sphi 0, %s49
      %s64 = sphi 0, %s50
      %s68 = sphi 0, %s68
      %s70 = sphi 0, %s68
      %s71 = sphi 0, %s70
      %s85 = sphi 0, %s71
      %s89 = sphi 0, %s89
      %s91 = sphi 0, %s89
      %s92 = sphi 0, %s91
      %s106 = sphi 0, %s92
      %s112 = sphi 0, %s114
      %s115 = sphi 0, %s112
      %s116 = sphi 0, %s115
      %s132 = sphi 0, %s116
    $region4: #{tpu_custom_call.1} parent=1 // loop_header_branch
      %16 = sbr.rel (%p14) target = $region8
    $region5: #{tpu_custom_call.1} parent=1 // loop_body
      %s18 = ssub.s32 %s13, 1
      %s19 = ssub.s32 %s13, 2
      %s20 = sadd.s32 %s13, 1
      %s21 = ssub.s32 %s13, %s20
      %p22 = scmp.eq.s32.totalorder %s21, 0
      %s24 = sadd.s32 %s23, 1
      %s25 = scalar_select %p22, %s23, %s24
      %p28 = pneg %p22
      %p29 = scmp.eq.s32.totalorder %s13, 1
      %p30 = por %p28, %p29
      %p31 = scmp.ne.s32.totalorder %s23, %s26
      %p32 = scmp.eq.s32.totalorder %s13, 0
      %p33 = por %p31, %p32
      %p34 = scmp.ne.s32.totalorder %s23, %s26
      %p35 = scmp.eq.s32.totalorder %s18, 1
      %p36 = por %p34, %p35
      %p37 = scmp.ne.s32.totalorder %s26, %s27
      %p38 = scmp.eq.s32.totalorder %s18, 0
      %p39 = por %p37, %p38
      %p40 = scmp.ne.s32.totalorder %s26, %s27
      %p41 = scmp.eq.s32.totalorder %s19, 1
      %p42 = por %p40, %p41
      %p44 = scmp.ne.s32.totalorder %s27, %s43
      %p45 = scmp.eq.s32.totalorder %s19, 0
      %p46 = por %p44, %p45
      %s48 = sadd.s32 %s47, 1
      %p51 = scmp.eq.s32.totalorder %s13, 1
      %p52 = scmp.ne.s32.totalorder %s47, %s49
      %p53 = scmp.eq.s32.totalorder %s13, 0
      %p54 = por %p52, %p53
      %p55 = scmp.ne.s32.totalorder %s47, %s49
      %p56 = scmp.eq.s32.totalorder %s18, 1
      %p57 = por %p55, %p56
      %p58 = scmp.ne.s32.totalorder %s49, %s50
      %p59 = scmp.eq.s32.totalorder %s18, 0
      %p60 = por %p58, %p59
      %p61 = scmp.ne.s32.totalorder %s49, %s50
      %p62 = scmp.eq.s32.totalorder %s19, 1
      %p63 = por %p61, %p62
      %p65 = scmp.ne.s32.totalorder %s50, %s64
      %p66 = scmp.eq.s32.totalorder %s19, 0
      %p67 = por %p65, %p66
      %s69 = sadd.s32 %s68, 1
      %p72 = scmp.eq.s32.totalorder %s13, 1
      %p73 = scmp.ne.s32.totalorder %s68, %s70
      %p74 = scmp.eq.s32.totalorder %s13, 0
      %p75 = por %p73, %p74
      %p76 = scmp.ne.s32.totalorder %s68, %s70
      %p77 = scmp.eq.s32.totalorder %s18, 1
      %p78 = por %p76, %p77
      %p79 = scmp.ne.s32.totalorder %s70, %s71
      %p80 = scmp.eq.s32.totalorder %s18, 0
      %p81 = por %p79, %p80
      %p82 = scmp.ne.s32.totalorder %s70, %s71
      %p83 = scmp.eq.s32.totalorder %s19, 1
      %p84 = por %p82, %p83
      %p86 = scmp.ne.s32.totalorder %s71, %s85
      %p87 = scmp.eq.s32.totalorder %s19, 0
      %p88 = por %p86, %p87
      %s90 = sadd.s32 %s89, 1
      %p93 = scmp.eq.s32.totalorder %s13, 1
      %p94 = scmp.ne.s32.totalorder %s89, %s91
      %p95 = scmp.eq.s32.totalorder %s13, 0
      %p96 = por %p94, %p95
      %p97 = scmp.ne.s32.totalorder %s89, %s91
      %p98 = scmp.eq.s32.totalorder %s18, 1
      %p99 = por %p97, %p98
      %p100 = scmp.ne.s32.totalorder %s91, %s92
      %p101 = scmp.eq.s32.totalorder %s18, 0
      %p102 = por %p100, %p101
      %p103 = scmp.ne.s32.totalorder %s91, %s92
      %p104 = scmp.eq.s32.totalorder %s19, 1
      %p105 = por %p103, %p104
      %p107 = scmp.ne.s32.totalorder %s92, %s106
      %p108 = scmp.eq.s32.totalorder %s19, 0
      %p109 = por %p107, %p108
      %s110 = ssub.s32 %s13, %s20
      %p111 = scmp.eq.s32.totalorder %s110, 0
      %s113 = sadd.s32 %s112, 1
      %s114 = scalar_select %p111, %s112, %s113
      %p117 = pneg %p111
      %p118 = scmp.eq.s32.totalorder %s13, 1
      %p119 = por %p117, %p118
      %p120 = scmp.ne.s32.totalorder %s112, %s115
      %p121 = scmp.eq.s32.totalorder %s13, 0
      %p122 = por %p120, %p121
      %p123 = scmp.ne.s32.totalorder %s112, %s115
      %p124 = scmp.eq.s32.totalorder %s18, 1
      %p125 = por %p123, %p124
      %p126 = scmp.ne.s32.totalorder %s115, %s116
      %p127 = scmp.eq.s32.totalorder %s18, 0
      %p128 = por %p126, %p127
      %p129 = scmp.ne.s32.totalorder %s115, %s116
      %p130 = scmp.eq.s32.totalorder %s19, 1
      %p131 = por %p129, %p130
      %p133 = scmp.ne.s32.totalorder %s116, %s132
      %p134 = scmp.eq.s32.totalorder %s19, 0
      %p135 = por %p133, %p134
      %p136 = scmp.le.s32.totalorder 1, %s13
      %p137 = scmp.lt.s32.totalorder %s13, 3
      %p138 = pnand %p136, %p137
      %p139 = pneg %p138
      // Predicated region
      $region9: #{tpu_custom_call.1} parent=5 // pred_check
        _
      $region10: #{tpu_custom_call.1} parent=5 // pred_check_branch
        %141 = sbr.rel (%p138) target = $region12
      $region11: #{tpu_custom_call.1} parent=5 // pred_region
        %s142 = ssub.s32 %s13, 1
        // Predicated region
        $region13: #{tpu_custom_call.1} parent=11 // pred_check
          %p143 = pneg %p60
        $region14: #{tpu_custom_call.1} parent=11 // pred_check_branch
          %145 = sbr.rel (%p143) target = $region16
        $region15: #{tpu_custom_call.1} parent=11 // pred_region
          _
        $region16: #{tpu_custom_call.1} parent=11 // pred_fallthru
          _
        // Predicated region
        $region17: #{tpu_custom_call.1} parent=11 // pred_check
          %p146 = pneg %p81
        $region18: #{tpu_custom_call.1} parent=11 // pred_check_branch
          %148 = sbr.rel (%p146) target = $region20
        $region19: #{tpu_custom_call.1} parent=11 // pred_region
          _
        $region20: #{tpu_custom_call.1} parent=11 // pred_fallthru
          _
        // Predicated region
        $region21: #{tpu_custom_call.1} parent=11 // pred_check
          %p149 = pneg %p102
        $region22: #{tpu_custom_call.1} parent=11 // pred_check_branch
          %151 = sbr.rel (%p149) target = $region24
        $region23: #{tpu_custom_call.1} parent=11 // pred_region
          _
        $region24: #{tpu_custom_call.1} parent=11 // pred_fallthru
          _
      $region12: #{tpu_custom_call.1} parent=5 // pred_fallthru
        _
      %p152 = scmp.lt.s32.totalorder %s13, 2
      // Predicated region
      $region25: #{tpu_custom_call.1} parent=5 // pred_check
        %p153 = pneg %p152
      $region26: #{tpu_custom_call.1} parent=5 // pred_check_branch
        %155 = sbr.rel (%p153) target = $region28
      $region27: #{tpu_custom_call.1} parent=5 // pred_region
        // Predicated region
        $region29: #{tpu_custom_call.1} parent=27 // pred_check
          %p156 = pneg %p33
        $region30: #{tpu_custom_call.1} parent=27 // pred_check_branch
          %158 = sbr.rel (%p156) target = $region32
        $region31: #{tpu_custom_call.1} parent=27 // pred_region
          %s159 = smul.u32 2, %s13
          %p160 = scmp.lt.s32.totalorder %s159, 3
          %s161 = scalar_select %p160, %s159, 3
          %s162 = smul.addr %s161, 32
          %s163 = smul.addr %s162, 4
          %s164 = scalar_lea.vmem %s0, %s163
          %s165 = smul.u32 2, %s13
        $region32: #{tpu_custom_call.1} parent=27 // pred_fallthru
          _
      $region28: #{tpu_custom_call.1} parent=5 // pred_fallthru
        _
      %p166 = scmp.le.s32.totalorder 1, %s13
      %p167 = scmp.lt.s32.totalorder %s13, 3
      %p168 = pnand %p166, %p167
      %p169 = pneg %p168
      // Predicated region
      $region33: #{tpu_custom_call.1} parent=5 // pred_check
        _
      $region34: #{tpu_custom_call.1} parent=5 // pred_check_branch
        %171 = sbr.rel (%p168) target = $region36
      $region35: #{tpu_custom_call.1} parent=5 // pred_region
        %s172 = ssub.s32 %s13, 1
        %s173 = smul.u32 2, %s18
        %p174 = scmp.lt.s32.totalorder %s173, 3
        %s175 = scalar_select %p174, %s173, 3
        %s176 = smul.addr %s175, 32
        %s177 = smul.addr %s176, 4
        %s178 = scalar_lea.vmem %s0, %s177
        %p179 = pneg %p39
        %p180 = pneg %p36
        %p181 = pneg %p60
        %p182 = pneg %p57
        %p183 = pneg %p81
        %p184 = pneg %p78
        %p185 = pneg %p102
        %p186 = pneg %p99
        %p187 = pneg %p128
        %p188 = pneg %p125
        %s189 = sand.u32 %s115, 1
        %s190 = scalar_lea.sflag [#allocation3], %s189
        %s191 = sand.u32 %s115, 1
        %s192 = smul.addr %s191, 32
        %s193 = scalar_lea.vmem [#allocation2], %s192
        %s194 = smul.u32 2, %s18
        %p195 = scmp.lt.s32.totalorder %s194, 3
        %s196 = scalar_select %p195, %s194, 3
        %s197 = smul.addr %s196, 32
        %s198 = smul.addr %s197, 4
        %s199 = scalar_lea.vmem %s0, %s198
        %s200 = smul.u32 2, %s18
        %s201 = smul.u32 2, %s18
        %v203 = vld [vmem:[%s1] sm:$0xff]
        %v204 = vld [vmem:[%s1 + $0x8] sm:$0xff]
        %v205 = vld [vmem:[%s199] sm:$0xf]
        %v206 = vld [vmem:[%s199 + $0x4] sm:$0xf]
        %v207 = vld [vmem:[%s199 + $0x8] sm:$0xf]
        %v208 = vld [vmem:[%s199 + $0xc] sm:$0xf]
        %v209 = vld [vmem:[%s199 + $0x10] sm:$0xf]
        %v210 = vld [vmem:[%s199 + $0x14] sm:$0xf]
        %v211 = vld [vmem:[%s199 + $0x18] sm:$0xf]
        %v212 = vld [vmem:[%s199 + $0x1c] sm:$0xf]
        %v213 = vld [vmem:[%s199 + $0x20] sm:$0xf]
        %v214 = vld [vmem:[%s199 + $0x24] sm:$0xf]
        %v215 = vld [vmem:[%s199 + $0x28] sm:$0xf]
        %v216 = vld [vmem:[%s199 + $0x2c] sm:$0xf]
        %v217 = vld [vmem:[%s199 + $0x30] sm:$0xf]
        %v218 = vld [vmem:[%s199 + $0x34] sm:$0xf]
        %v219 = vld [vmem:[%s199 + $0x38] sm:$0xf]
        %v220 = vld [vmem:[%s199 + $0x3c] sm:$0xf]
        %v221 = vld [vmem:[%s199 + $0x40] sm:$0xf]
        %v222 = vld [vmem:[%s199 + $0x44] sm:$0xf]
        %v223 = vld [vmem:[%s199 + $0x48] sm:$0xf]
        %v224 = vld [vmem:[%s199 + $0x4c] sm:$0xf]
        %v225 = vld [vmem:[%s199 + $0x50] sm:$0xf]
        %v226 = vld [vmem:[%s199 + $0x54] sm:$0xf]
        %v227 = vld [vmem:[%s199 + $0x58] sm:$0xf]
        %v228 = vld [vmem:[%s199 + $0x5c] sm:$0xf]
        %v229 = vld [vmem:[%s199 + $0x60] sm:$0xf]
        %v230 = vld [vmem:[%s199 + $0x64] sm:$0xf]
        %v231 = vld [vmem:[%s199 + $0x68] sm:$0xf]
        %v232 = vld [vmem:[%s199 + $0x6c] sm:$0xf]
        %v233 = vld [vmem:[%s199 + $0x70] sm:$0xf]
        %v234 = vld [vmem:[%s199 + $0x74] sm:$0xf]
        %v235 = vld [vmem:[%s199 + $0x78] sm:$0xf]
        %v236 = vld [vmem:[%s199 + $0x7c] sm:$0xf]
        %v239 = vunpack.c.l.b16 %v203
        %v240 = vunpack.c.h.b16 %v203
        %v241 = vunpack.c.l.b16 %v204
        %v242 = vunpack.c.h.b16 %v204
        %v243 = vpack.c.b16 %v241, %v239
        %v244 = vpack.c.b16 %v242, %v240
        %v279 = vunpack.c.l.b16 %v205
        %v280 = vunpack.c.l.b16 %v206
        %v281 = vunpack.c.l.b16 %v207
        %v282 = vunpack.c.l.b16 %v208
        %v283 = vunpack.c.l.b16 %v209
        %v284 = vunpack.c.l.b16 %v210
        %v285 = vunpack.c.l.b16 %v211
        %v286 = vunpack.c.l.b16 %v212
        %v287 = vunpack.c.l.b16 %v213
        %v288 = vunpack.c.l.b16 %v214
        %v289 = vunpack.c.l.b16 %v215
        %v290 = vunpack.c.l.b16 %v216
        %v291 = vunpack.c.l.b16 %v217
        %v292 = vunpack.c.l.b16 %v218
        %v293 = vunpack.c.l.b16 %v219
        %v294 = vunpack.c.l.b16 %v220
        %v295 = vunpack.c.l.b16 %v221
        %v296 = vunpack.c.l.b16 %v222
        %v297 = vunpack.c.l.b16 %v223
        %v298 = vunpack.c.l.b16 %v224
        %v299 = vunpack.c.l.b16 %v225
        %v300 = vunpack.c.l.b16 %v226
        %v301 = vunpack.c.l.b16 %v227
        %v302 = vunpack.c.l.b16 %v228
        %v303 = vunpack.c.l.b16 %v229
        %v304 = vunpack.c.l.b16 %v230
        %v305 = vunpack.c.l.b16 %v231
        %v306 = vunpack.c.l.b16 %v232
        %v307 = vunpack.c.l.b16 %v233
        %v308 = vunpack.c.l.b16 %v234
        %v309 = vunpack.c.l.b16 %v235
        %v310 = vunpack.c.l.b16 %v236
        %v311 = vpack.c.b16 %v280, %v279
        %v312 = vpack.c.b16 %v282, %v281
        %v313 = vpack.c.b16 %v284, %v283
        %v314 = vpack.c.b16 %v286, %v285
        %v315 = vpack.c.b16 %v288, %v287
        %v316 = vpack.c.b16 %v290, %v289
        %v317 = vpack.c.b16 %v292, %v291
        %v318 = vpack.c.b16 %v294, %v293
        %v319 = vpack.c.b16 %v296, %v295
        %v320 = vpack.c.b16 %v298, %v297
        %v321 = vpack.c.b16 %v300, %v299
        %v322 = vpack.c.b16 %v302, %v301
        %v323 = vpack.c.b16 %v304, %v303
        %v324 = vpack.c.b16 %v306, %v305
        %v325 = vpack.c.b16 %v308, %v307
        %v326 = vpack.c.b16 %v310, %v309
        %343 = vmatprep.subr.bf16.mxu0 0
        %344 = vmatpush1.bf16.msra.mxu0 %v318
        %345 = vmatprep.subr.bf16.mxu0 0
        %346 = vmatpush1.bf16.msra.mxu0 %v317
        %347 = vmatprep.subr.bf16.mxu0 0
        %348 = vmatpush1.bf16.msra.mxu0 %v316
        %349 = vmatprep.subr.bf16.mxu0 0
        %350 = vmatpush1.bf16.msra.mxu0 %v315
        %351 = vmatprep.subr.bf16.mxu0 0
        %352 = vmatpush1.bf16.msra.mxu0 %v314
        %353 = vmatprep.subr.bf16.mxu0 0
        %354 = vmatpush1.bf16.msra.mxu0 %v313
        %355 = vmatprep.subr.bf16.mxu0 0
        %356 = vmatpush1.bf16.msra.mxu0 %v312
        %357 = vmatprep.subr.bf16.mxu0 0
        %358 = vmatpush1.bf16.msra.mxu0 %v311
        %359 = vmatprep.subr.bf16.mxu0 0
        %360 = vmatpush2.bf16.msra.mxu0 %v326
        %361 = vmatprep.subr.bf16.mxu0 0
        %362 = vmatpush2.bf16.msra.mxu0 %v325
        %363 = vmatprep.subr.bf16.mxu0 0
        %364 = vmatpush2.bf16.msra.mxu0 %v324
        %365 = vmatprep.subr.bf16.mxu0 0
        %366 = vmatpush2.bf16.msra.mxu0 %v323
        %367 = vmatprep.subr.bf16.mxu0 0
        %368 = vmatpush2.bf16.msra.mxu0 %v322
        %369 = vmatprep.subr.bf16.mxu0 0
        %370 = vmatpush2.bf16.msra.mxu0 %v321
        %371 = vmatprep.subr.bf16.mxu0 0
        %372 = vmatpush2.bf16.msra.mxu0 %v320
        %373 = vmatprep.subr.bf16.mxu0 0
        %374 = vmatpush2.bf16.msra.mxu0 %v319
        %375 = vmatprep.mubr.bf16.mxu0 %v244
        %376 = vmatmul.mubr.bf16.gmra.mxu0 %v243
        %v377 = vpop.f32.mrf.mxu0
        %v378 = vadd.f32 0.0, %v377
        %v379 = vpop.f32.mrf.mxu0
        %v380 = vpop.f32.mrf.mxu0
        %v381 = vadd.f32 0.0, %v380
        %v382 = vpop.f32.mrf.mxu0
        %383 = vdwg.mxu0
        %s384 = scalar_lea.vmem %s199, 128
        %v385 = vld [vmem:[%s384] sm:$0xf]
        %v386 = vld [vmem:[%s384 + $0x4] sm:$0xf]
        %v387 = vld [vmem:[%s384 + $0x8] sm:$0xf]
        %v388 = vld [vmem:[%s384 + $0xc] sm:$0xf]
        %v389 = vld [vmem:[%s384 + $0x10] sm:$0xf]
        %v390 = vld [vmem:[%s384 + $0x14] sm:$0xf]
        %v391 = vld [vmem:[%s384 + $0x18] sm:$0xf]
        %v392 = vld [vmem:[%s384 + $0x1c] sm:$0xf]
        %v393 = vld [vmem:[%s384 + $0x20] sm:$0xf]
        %v394 = vld [vmem:[%s384 + $0x24] sm:$0xf]
        %v395 = vld [vmem:[%s384 + $0x28] sm:$0xf]
        %v396 = vld [vmem:[%s384 + $0x2c] sm:$0xf]
        %v397 = vld [vmem:[%s384 + $0x30] sm:$0xf]
        %v398 = vld [vmem:[%s384 + $0x34] sm:$0xf]
        %v399 = vld [vmem:[%s384 + $0x38] sm:$0xf]
        %v400 = vld [vmem:[%s384 + $0x3c] sm:$0xf]
        %v401 = vld [vmem:[%s384 + $0x40] sm:$0xf]
        %v402 = vld [vmem:[%s384 + $0x44] sm:$0xf]
        %v403 = vld [vmem:[%s384 + $0x48] sm:$0xf]
        %v404 = vld [vmem:[%s384 + $0x4c] sm:$0xf]
        %v405 = vld [vmem:[%s384 + $0x50] sm:$0xf]
        %v406 = vld [vmem:[%s384 + $0x54] sm:$0xf]
        %v407 = vld [vmem:[%s384 + $0x58] sm:$0xf]
        %v408 = vld [vmem:[%s384 + $0x5c] sm:$0xf]
        %v409 = vld [vmem:[%s384 + $0x60] sm:$0xf]
        %v410 = vld [vmem:[%s384 + $0x64] sm:$0xf]
        %v411 = vld [vmem:[%s384 + $0x68] sm:$0xf]
        %v412 = vld [vmem:[%s384 + $0x6c] sm:$0xf]
        %v413 = vld [vmem:[%s384 + $0x70] sm:$0xf]
        %v414 = vld [vmem:[%s384 + $0x74] sm:$0xf]
        %v415 = vld [vmem:[%s384 + $0x78] sm:$0xf]
        %v416 = vld [vmem:[%s384 + $0x7c] sm:$0xf]
        %v449 = vunpack.c.l.b16 %v385
        %v450 = vunpack.c.l.b16 %v386
        %v451 = vunpack.c.l.b16 %v387
        %v452 = vunpack.c.l.b16 %v388
        %v453 = vunpack.c.l.b16 %v389
        %v454 = vunpack.c.l.b16 %v390
        %v455 = vunpack.c.l.b16 %v391
        %v456 = vunpack.c.l.b16 %v392
        %v457 = vunpack.c.l.b16 %v393
        %v458 = vunpack.c.l.b16 %v394
        %v459 = vunpack.c.l.b16 %v395
        %v460 = vunpack.c.l.b16 %v396
        %v461 = vunpack.c.l.b16 %v397
        %v462 = vunpack.c.l.b16 %v398
        %v463 = vunpack.c.l.b16 %v399
        %v464 = vunpack.c.l.b16 %v400
        %v465 = vunpack.c.l.b16 %v401
        %v466 = vunpack.c.l.b16 %v402
        %v467 = vunpack.c.l.b16 %v403
        %v468 = vunpack.c.l.b16 %v404
        %v469 = vunpack.c.l.b16 %v405
        %v470 = vunpack.c.l.b16 %v406
        %v471 = vunpack.c.l.b16 %v407
        %v472 = vunpack.c.l.b16 %v408
        %v473 = vunpack.c.l.b16 %v409
        %v474 = vunpack.c.l.b16 %v410
        %v475 = vunpack.c.l.b16 %v411
        %v476 = vunpack.c.l.b16 %v412
        %v477 = vunpack.c.l.b16 %v413
        %v478 = vunpack.c.l.b16 %v414
        %v479 = vunpack.c.l.b16 %v415
        %v480 = vunpack.c.l.b16 %v416
        %v481 = vpack.c.b16 %v450, %v449
        %v482 = vpack.c.b16 %v452, %v451
        %v483 = vpack.c.b16 %v454, %v453
        %v484 = vpack.c.b16 %v456, %v455
        %v485 = vpack.c.b16 %v458, %v457
        %v486 = vpack.c.b16 %v460, %v459
        %v487 = vpack.c.b16 %v462, %v461
        %v488 = vpack.c.b16 %v464, %v463
        %v489 = vpack.c.b16 %v466, %v465
        %v490 = vpack.c.b16 %v468, %v467
        %v491 = vpack.c.b16 %v470, %v469
        %v492 = vpack.c.b16 %v472, %v471
        %v493 = vpack.c.b16 %v474, %v473
        %v494 = vpack.c.b16 %v476, %v475
        %v495 = vpack.c.b16 %v478, %v477
        %v496 = vpack.c.b16 %v480, %v479
        %513 = vmatprep.subr.bf16.mxu0 0
        %514 = vmatpush1.bf16.msra.mxu0 %v488
        %515 = vmatprep.subr.bf16.mxu0 0
        %516 = vmatpush1.bf16.msra.mxu0 %v487
        %517 = vmatprep.subr.bf16.mxu0 0
        %518 = vmatpush1.bf16.msra.mxu0 %v486
        %519 = vmatprep.subr.bf16.mxu0 0
        %520 = vmatpush1.bf16.msra.mxu0 %v485
        %521 = vmatprep.subr.bf16.mxu0 0
        %522 = vmatpush1.bf16.msra.mxu0 %v484
        %523 = vmatprep.subr.bf16.mxu0 0
        %524 = vmatpush1.bf16.msra.mxu0 %v483
        %525 = vmatprep.subr.bf16.mxu0 0
        %526 = vmatpush1.bf16.msra.mxu0 %v482
        %527 = vmatprep.subr.bf16.mxu0 0
        %528 = vmatpush1.bf16.msra.mxu0 %v481
        %529 = vmatprep.subr.bf16.mxu0 0
        %530 = vmatpush2.bf16.msra.mxu0 %v496
        %531 = vmatprep.subr.bf16.mxu0 0
        %532 = vmatpush2.bf16.msra.mxu0 %v495
        %533 = vmatprep.subr.bf16.mxu0 0
        %534 = vmatpush2.bf16.msra.mxu0 %v494
        %535 = vmatprep.subr.bf16.mxu0 0
        %536 = vmatpush2.bf16.msra.mxu0 %v493
        %537 = vmatprep.subr.bf16.mxu0 0
        %538 = vmatpush2.bf16.msra.mxu0 %v492
        %539 = vmatprep.subr.bf16.mxu0 0
        %540 = vmatpush2.bf16.msra.mxu0 %v491
        %541 = vmatprep.subr.bf16.mxu0 0
        %542 = vmatpush2.bf16.msra.mxu0 %v490
        %543 = vmatprep.subr.bf16.mxu0 0
        %544 = vmatpush2.bf16.msra.mxu0 %v489
        %545 = vmatprep.mubr.bf16.mxu0 %v244
        %546 = vmatmul.mubr.bf16.gmra.mxu0 %v243
        %v547 = vpop.f32.mrf.mxu0
        %v548 = vadd.f32 0.0, %v547
        %v549 = vpop.f32.mrf.mxu0
        %v550 = vpop.f32.mrf.mxu0
        %v551 = vadd.f32 0.0, %v550
        %v552 = vpop.f32.mrf.mxu0
        %553 = vdwg.mxu0
        %v554 = vpack.c.bf16 %v381, %v378
        %v555 = vpack.c.bf16 %v551, %v548
        %v556 = vld [vmem:[%s2] sm:$0xf]
        %v557 = vld [vmem:[%s2 + $0x4] sm:$0xf]
        %v558 = vld [vmem:[%s2 + $0x8] sm:$0xf]
        %v559 = vld [vmem:[%s2 + $0xc] sm:$0xf]
        %v560 = vld [vmem:[%s3] sm:$0x1]
        %v561 = vlaneseq
        %v562 = vshrl.u32 %v561, 7
        %v563 = vsub.s32 0, %v562
        %v564 = vrot.slane %v560, %v563
        %v569 = vunpack.c.l.b16 %v556
        %v570 = vunpack.c.l.b16 %v557
        %v571 = vunpack.c.l.b16 %v558
        %v572 = vunpack.c.l.b16 %v559
        %v573 = vpack.c.b16 %v570, %v569
        %v574 = vpack.c.b16 %v572, %v571
        %vm577 = vcmask 261120
        %v579 = vsel %vm577, %v554, 0
        %v582 = vsel %vm577, %v555, 0
        %584 = vmatprep.subr.bf16.mxu0 0
        %585 = vmatpush1.bf16.msra.mxu0 0
        %586 = vmatprep.subr.bf16.mxu0 0
        %587 = vmatpush1.bf16.msra.mxu0 0
        %588 = vmatprep.subr.bf16.mxu0 0
        %589 = vmatpush1.bf16.msra.mxu0 0
        %590 = vmatprep.subr.bf16.mxu0 0
        %591 = vmatpush1.bf16.msra.mxu0 0
        %592 = vmatprep.subr.bf16.mxu0 0
        %593 = vmatpush1.bf16.msra.mxu0 0
        %594 = vmatprep.subr.bf16.mxu0 0
        %595 = vmatpush1.bf16.msra.mxu0 0
        %596 = vmatprep.subr.bf16.mxu0 0
        %597 = vmatpush1.bf16.msra.mxu0 %v574
        %598 = vmatprep.subr.bf16.mxu0 0
        %599 = vmatpush1.bf16.msra.mxu0 %v573
        %600 = vmatprep.subr.bf16.mxu0 0
        %601 = vmatpush2.bf16.msra.mxu0 0
        %602 = vmatprep.subr.bf16.mxu0 0
        %603 = vmatpush2.bf16.msra.mxu0 0
        %604 = vmatprep.subr.bf16.mxu0 0
        %605 = vmatpush2.bf16.msra.mxu0 0
        %606 = vmatprep.subr.bf16.mxu0 0
        %607 = vmatpush2.bf16.msra.mxu0 0
        %608 = vmatprep.subr.bf16.mxu0 0
        %609 = vmatpush2.bf16.msra.mxu0 0
        %610 = vmatprep.subr.bf16.mxu0 0
        %611 = vmatpush2.bf16.msra.mxu0 0
        %612 = vmatprep.subr.bf16.mxu0 0
        %613 = vmatpush2.bf16.msra.mxu0 0
        %614 = vmatprep.subr.bf16.mxu0 0
        %615 = vmatpush2.bf16.msra.mxu0 0
        %616 = vmatprep.mubr.bf16.mxu0 0
        %617 = vmatmul.mubr.bf16.gmra.mxu0 %v579
        %v618 = vpop.f32.mrf.mxu0
        %v619 = vadd.f32 %v564, %v618
        %v620 = vpop.f32.mrf.mxu0
        %v621 = vpop.f32.mrf.mxu0
        %v622 = vadd.f32 %v564, %v621
        %v623 = vpop.f32.mrf.mxu0
        %624 = vmatprep.mubr.bf16.mxu0 0
        %625 = vmatmul.mubr.bf16.gmra.mxu0 %v582
        %v626 = vpop.f32.mrf.mxu0
        %v627 = vadd.f32 %v564, %v626
        %v628 = vpop.f32.mrf.mxu0
        %v629 = vpop.f32.mrf.mxu0
        %v630 = vadd.f32 %v564, %v629
        %v631 = vpop.f32.mrf.mxu0
        %632 = vdwg.mxu0
        %633 = vadd.xlane.f32.xlu0 %v619
        %v634 = vpop.xlane.xlu0 %633
        %635 = vadd.xlane.f32.xlu0 %v622
        %v636 = vpop.xlane.xlu0 %635
        %637 = vadd.xlane.f32.xlu0 %v627
        %v638 = vpop.xlane.xlu0 %637
        %639 = vadd.xlane.f32.xlu0 %v630
        %v640 = vpop.xlane.xlu0 %639
        %v641 = vrcp.pop 128.0
        %v642 = vmul.f32 %v634, %v641
        %v643 = vmul.f32 %v636, %v641
        %v644 = vmul.f32 %v638, %v641
        %v645 = vmul.f32 %v640, %v641
        %v646 = vmul.f32 %v619, %v619
        %v647 = vmul.f32 %v622, %v622
        %v648 = vmul.f32 %v627, %v627
        %v649 = vmul.f32 %v630, %v630
        %650 = vadd.xlane.f32.xlu0 %v646
        %v651 = vpop.xlane.xlu0 %650
        %652 = vadd.xlane.f32.xlu0 %v647
        %v653 = vpop.xlane.xlu0 %652
        %654 = vadd.xlane.f32.xlu0 %v648
        %v655 = vpop.xlane.xlu0 %654
        %656 = vadd.xlane.f32.xlu0 %v649
        %v657 = vpop.xlane.xlu0 %656
        %v658 = vmul.f32 %v651, %v641
        %v659 = vmul.f32 %v653, %v641
        %v660 = vmul.f32 %v655, %v641
        %v661 = vmul.f32 %v657, %v641
        %v662 = vmul.f32 %v642, %v642
        %v663 = vmul.f32 %v643, %v643
        %v664 = vmul.f32 %v644, %v644
        %v665 = vmul.f32 %v645, %v645
        %v666 = vsub.f32 %v658, %v662
        %v667 = vsub.f32 %v659, %v663
        %v668 = vsub.f32 %v660, %v664
        %v669 = vsub.f32 %v661, %v665
        %v670 = vadd.f32 %v666, 1e-06
        %v671 = vadd.f32 %v667, 1e-06
        %v672 = vadd.f32 %v668, 1e-06
        %v673 = vadd.f32 %v669, 1e-06
        %v674 = vrsqrt.pop %v670
        %v675 = vrsqrt.pop %v671
        %v676 = vrsqrt.pop %v672
        %v677 = vrsqrt.pop %v673
        %v678 = vsub.f32 %v619, %v642
        %v679 = vsub.f32 %v622, %v643
        %v680 = vsub.f32 %v627, %v644
        %v681 = vsub.f32 %v630, %v645
        %v682 = vmul.f32 %v678, %v674
        %v683 = vmul.f32 %v679, %v675
        %v684 = vmul.f32 %v680, %v676
        %v685 = vmul.f32 %v681, %v677
        %v686 = vld [vmem:[%s3 + $0x1] sm:$0x1]
        %v687 = vlaneseq
        %v688 = vshrl.u32 %v687, 7
        %v689 = vsub.s32 0, %v688
        %v690 = vrot.slane %v686, %v689
        %v691 = vmul.f32 %v682, %v690
        %v692 = vmul.f32 %v683, %v690
        %v693 = vmul.f32 %v684, %v690
        %v694 = vmul.f32 %v685, %v690
        %v695 = vld [vmem:[%s3 + $0x2] sm:$0x1]
        %v696 = vlaneseq
        %v697 = vshrl.u32 %v696, 7
        %v698 = vsub.s32 0, %v697
        %v699 = vrot.slane %v695, %v698
        %v700 = vadd.f32 %v691, %v699
        %v701 = vadd.f32 %v692, %v699
        %v702 = vadd.f32 %v693, %v699
        %v703 = vadd.f32 %v694, %v699
        %v704 = vmul.f32 %v700, 0.5
        %v705 = vmul.f32 %v701, 0.5
        %v706 = vmul.f32 %v702, 0.5
        %v707 = vmul.f32 %v703, 0.5
        %v708 = vmul.f32 %v700, 0.70710677
        %v709 = vmul.f32 %v701, 0.70710677
        %v710 = vmul.f32 %v702, 0.70710677
        %v711 = vmul.f32 %v703, 0.70710677
        %vm712 = vcmp.lt.f32.partialorder %v708, 0.0
        %vm713 = vcmp.lt.f32.partialorder %v709, 0.0
        %vm714 = vcmp.lt.f32.partialorder %v710, 0.0
        %vm715 = vcmp.lt.f32.partialorder %v711, 0.0
        %v716 = vsel %vm712, -1.0, 1.0
        %v717 = vsel %vm713, -1.0, 1.0
        %v718 = vsel %vm714, -1.0, 1.0
        %v719 = vsel %vm715, -1.0, 1.0
        %v720 = vand.u32 2147483647, %v708
        %v721 = vand.u32 2147483647, %v709
        %v722 = vand.u32 2147483647, %v710
        %v723 = vand.u32 2147483647, %v711
        %v724 = vmul.f32 %v720, 0.3275911
        %v725 = vmul.f32 %v721, 0.3275911
        %v726 = vmul.f32 %v722, 0.3275911
        %v727 = vmul.f32 %v723, 0.3275911
        %v728 = vadd.f32 %v724, 1.0
        %v729 = vadd.f32 %v725, 1.0
        %v730 = vadd.f32 %v726, 1.0
        %v731 = vadd.f32 %v727, 1.0
        %v732 = vrcp.pop %v728
        %v733 = vmul.f32 1.0, %v732
        %v734 = vrcp.pop %v729
        %v735 = vmul.f32 1.0, %v734
        %v736 = vrcp.pop %v730
        %v737 = vmul.f32 1.0, %v736
        %v738 = vrcp.pop %v731
        %v739 = vmul.f32 1.0, %v738
        %v740 = vmul.f32 %v733, 1.0614054
        %v741 = vmul.f32 %v735, 1.0614054
        %v742 = vmul.f32 %v737, 1.0614054
        %v743 = vmul.f32 %v739, 1.0614054
        %v744 = vadd.f32 %v740, -1.4531521
        %v745 = vadd.f32 %v741, -1.4531521
        %v746 = vadd.f32 %v742, -1.4531521
        %v747 = vadd.f32 %v743, -1.4531521
        %v748 = vmul.f32 %v744, %v733
        %v749 = vmul.f32 %v745, %v735
        %v750 = vmul.f32 %v746, %v737
        %v751 = vmul.f32 %v747, %v739
        %v752 = vadd.f32 %v748, 1.4214138
        %v753 = vadd.f32 %v749, 1.4214138
        %v754 = vadd.f32 %v750, 1.4214138
        %v755 = vadd.f32 %v751, 1.4214138
        %v756 = vmul.f32 %v752, %v733
        %v757 = vmul.f32 %v753, %v735
        %v758 = vmul.f32 %v754, %v737
        %v759 = vmul.f32 %v755, %v739
        %v760 = vadd.f32 %v756, -0.28449672
        %v761 = vadd.f32 %v757, -0.28449672
        %v762 = vadd.f32 %v758, -0.28449672
        %v763 = vadd.f32 %v759, -0.28449672
        %v764 = vmul.f32 %v760, %v733
        %v765 = vmul.f32 %v761, %v735
        %v766 = vmul.f32 %v762, %v737
        %v767 = vmul.f32 %v763, %v739
        %v768 = vadd.f32 %v764, 0.2548296
        %v769 = vadd.f32 %v765, 0.2548296
        %v770 = vadd.f32 %v766, 0.2548296
        %v771 = vadd.f32 %v767, 0.2548296
        %v772 = vmul.f32 %v768, %v733
        %v773 = vmul.f32 %v769, %v735
        %v774 = vmul.f32 %v770, %v737
        %v775 = vmul.f32 %v771, %v739
        %v776 = vsub.f32 0.0, %v720
        %v777 = vsub.f32 0.0, %v721
        %v778 = vsub.f32 0.0, %v722
        %v779 = vsub.f32 0.0, %v723
        %v780 = vmul.f32 %v776, %v720
        %v781 = vmul.f32 %v777, %v721
        %v782 = vmul.f32 %v778, %v722
        %v783 = vmul.f32 %v779, %v723
        %v784 = vmul.f32 %v780, 1.442695
        %v785 = vpow.pop %v784
        %v786 = vmul.f32 %v781, 1.442695
        %v787 = vpow.pop %v786
        %v788 = vmul.f32 %v782, 1.442695
        %v789 = vpow.pop %v788
        %v790 = vmul.f32 %v783, 1.442695
        %v791 = vpow.pop %v790
        %v792 = vmul.f32 %v772, %v785
        %v793 = vmul.f32 %v773, %v787
        %v794 = vmul.f32 %v774, %v789
        %v795 = vmul.f32 %v775, %v791
        %v796 = vsub.f32 1.0, %v792
        %v797 = vsub.f32 1.0, %v793
        %v798 = vsub.f32 1.0, %v794
        %v799 = vsub.f32 1.0, %v795
        %v800 = vmul.f32 %v716, %v796
        %v801 = vmul.f32 %v717, %v797
        %v802 = vmul.f32 %v718, %v798
        %v803 = vmul.f32 %v719, %v799
        %v804 = vadd.f32 %v800, 1.0
        %v805 = vadd.f32 %v801, 1.0
        %v806 = vadd.f32 %v802, 1.0
        %v807 = vadd.f32 %v803, 1.0
        %v808 = vmul.f32 %v704, %v804
        %v809 = vmul.f32 %v705, %v805
        %v810 = vmul.f32 %v706, %v806
        %v811 = vmul.f32 %v707, %v807
        %812 = vst [vmem:[%s193] sm:$0xff] %v808
        %813 = vst [vmem:[%s193 + $0x8] sm:$0xff] %v809
        %814 = vst [vmem:[%s193 + $0x10] sm:$0xff] %v810
        %815 = vst [vmem:[%s193 + $0x18] sm:$0xff] %v811
        %s816 = sand.u32 %s115, 1
        %s817 = scalar_lea.sflag [#allocation3], %s816
        %s818 = sand.u32 %s115, 1
        %s819 = smul.addr %s818, 32
        %s820 = scalar_lea.vmem [#allocation2], %s819
        // Predicated region
        $region37: #{tpu_custom_call.1} parent=35 // pred_check
          %p821 = pneg %p125
        $region38: #{tpu_custom_call.1} parent=35 // pred_check_branch
          %823 = sbr.rel (%p821) target = $region40
        $region39: #{tpu_custom_call.1} parent=35 // pred_region
          %s824 = smul.u32 2, %s18
          %s826 = ssub.s32 512, 512
          %827 = vsyncadd %s817, %s826
          %s828 = smul.addr %s824, 2
          %s829 = smul.addr %s828, 128
          %s830 = scalar_lea.hbm %s4, %s829
          %s831 = sshll.u32 %s820, 4
          %s832 = int_to_ptr.vmem [resolvable:$true] %s831
          %837 = dma.vmem_to_hbm [thread:$0]  %s832, 512, %s830, %s817, 128, 128, 8
        $region40: #{tpu_custom_call.1} parent=35 // pred_fallthru
          _
      $region36: #{tpu_custom_call.1} parent=5 // pred_fallthru
        _
      %p838 = scmp.le.s32.totalorder 2, %s13
      // Predicated region
      $region41: #{tpu_custom_call.1} parent=5 // pred_check
        %p839 = pneg %p838
      $region42: #{tpu_custom_call.1} parent=5 // pred_check_branch
        %841 = sbr.rel (%p839) target = $region44
      $region43: #{tpu_custom_call.1} parent=5 // pred_region
        %s842 = ssub.s32 %s13, 2
        // Predicated region
        $region45: #{tpu_custom_call.1} parent=43 // pred_check
          %p843 = pneg %p131
        $region46: #{tpu_custom_call.1} parent=43 // pred_check_branch
          %845 = sbr.rel (%p843) target = $region48
        $region47: #{tpu_custom_call.1} parent=43 // pred_region
          %s846 = sand.u32 %s116, 1
          %s847 = scalar_lea.sflag [#allocation3], %s846
          %s848 = sand.u32 %s116, 1
          %s849 = smul.addr %s848, 32
          %s850 = scalar_lea.vmem [#allocation2], %s849
          %851 = dma.done %s847, 512
        $region48: #{tpu_custom_call.1} parent=43 // pred_fallthru
          _
      $region44: #{tpu_custom_call.1} parent=5 // pred_fallthru
        _
    $region6: #{tpu_custom_call.1} parent=1 // loop_footer
      %s17 = sadd.s32 1, %s13
    $region7: #{tpu_custom_call.1} parent=1 // loop_footer_branch
      %12 = sbr.rel target = $region3
    $region8: #{tpu_custom_call.1} parent=1 // loop_exit
      _
    %852 = vsyncpa [#allocation3], 1
    %s853 = scalar_lea.sflag [#allocation3], 1
    %854 = vsyncpa %s853, 1

</llo_original>
